<compile_context>
chip_gen: v5e
topology: v5e:2x2
jax: 0.10.0
libtpu: 0.0.40
codegen_flags: <defaults>
</compile_context>

<pallas_src>
import functools

import jax
import jax.numpy as jnp
from jax.experimental import pallas as pl
from jax.experimental.pallas import tpu as pltpu


def _round_up(n: int, m: int) -> int:
    return ((n + m - 1) // m) * m


# --------------------------------------------------------------------------- #
# Kernel body: fc1 -> ReLU -> fc2 fused; hidden activations never leave VMEM.  #
# --------------------------------------------------------------------------- #
def _collab_kernel(x_ref, w1_ref, b1_ref, w2_ref, b2_ref, out_ref):
    # Cast activations to the weight dtype *inside* the kernel so the wrapper
    # never materializes a bf16 copy of x in HBM.  No-op for the all-f32 path.
    x = x_ref[...].astype(w1_ref.dtype)
    # fc1 on the MXU with f32 accumulation; bias-add + ReLU on the VPU in f32.
    h = jnp.dot(x, w1_ref[...], preferred_element_type=jnp.float32)
    h = jnp.maximum(h + b1_ref[...], 0.0)           # (1, H) broadcasts over rows
    # fc2 (MXU, f32 accumulation) + bias.
    y = jnp.dot(h.astype(w2_ref.dtype), w2_ref[...],
                preferred_element_type=jnp.float32)
    out_ref[...] = (y + b2_ref[...]).astype(out_ref.dtype)


@functools.lru_cache(maxsize=None)
def _buffered_one_supported() -> bool:
    """One-time probe: does this JAX/Mosaic accept pipeline_mode=pl.Buffered(1)?"""
    try:
        def _k(x_ref, o_ref):
            o_ref[...] = x_ref[...] + 1.0

        spec = pl.BlockSpec((8, 128), lambda i: (0, 0),
                            pipeline_mode=pl.Buffered(1))
        fn = pl.pallas_call(
            _k,
            out_shape=jax.ShapeDtypeStruct((8, 128), jnp.float32),
            grid=(1,),
            in_specs=[spec],
            out_specs=pl.BlockSpec((8, 128), lambda i: (0, 0)),
        )
        jax.block_until_ready(fn(jnp.zeros((8, 128), jnp.float32)))
        return True
    except Exception:   # any failure -> fall back to default (double) buffering
        return False


def _vmem_capacity_bytes() -> int:
    """Per-core VMEM capacity; conservative v7x fallback if the query fails."""
    try:
        return int(pltpu.get_tpu_info().vmem_capacity_bytes)
    except Exception:
        return 64 * 1024 * 1024


def collaboration_net_forward(x, w1, b1, w2, b2, *,
                              block_b: int = 2048,
                              compute_dtype=jnp.bfloat16,
                              out_dtype=jnp.float32,
                              pad_k: bool = True):
    """Forward pass of CollaborationNet.

    x : (B, C, D) activations.
    w1: (C*D, H)  fc1 weight, already transposed to (in, out) layout.
    b1: (H,)      fc1 bias.
    w2: (H, D)    fc2 weight, (in, out) layout.
    b2: (D,)      fc2 bias.
    compute_dtype: MXU operand dtype for weights/activations (accumulation and
                   bias/ReLU stay f32).  None => exact f32 everywhere.
    out_dtype:     kernel writeback dtype (bf16 halves the padded output stream
                   if the consumer tolerates it).
    Returns (B, D) in `out_dtype`, matching the PyTorch forward (no softmax).
    """
    B = x.shape[0]
    x2d = x.reshape(B, -1)                               # nn.Flatten()
    in_dim = x2d.shape[1]
    hidden = w1.shape[1]
    out_dim = w2.shape[1]
    assert w1.shape == (in_dim, hidden)
    assert w2.shape == (hidden, out_dim)
    assert b1.shape == (hidden,) and b2.shape == (out_dim,)

    # ---- Lane-dense K: pad the contraction dim to a multiple of 128. --------
    # Added w1 rows are zero, so results are exact.  (Trade-off: when K isn't
    # already aligned this is one extra HBM copy of x; disable via pad_k=False
    # for deployments that are strictly x-stream bound.)
    in_pad = _round_up(in_dim, 128) if pad_k else in_dim
    if in_pad != in_dim:
        x2d = jnp.pad(x2d, ((0, 0), (0, in_pad - in_dim)))
        w1 = jnp.pad(w1, ((0, in_pad - in_dim), (0, 0)))

    # ---- Lane-dense output: pad fc2's output columns to a multiple of 128 so
    # the final store is an unmasked full-lane vst; the real `out_dim` columns
    # are sliced back out below (free layout plumbing). ----------------------
    out_pad = _round_up(max(out_dim, 128), 128)
    if out_pad != out_dim:
        w2p = jnp.zeros((hidden, out_pad), w2.dtype).at[:, :out_dim].set(w2)
        b2p = jnp.zeros((out_pad,), b2.dtype).at[:out_dim].set(b2)
    else:
        w2p, b2p = w2, b2

    # bf16 MXU operands: cast only the (small, resident) weights in the wrapper;
    # the activation cast happens inside the kernel so x is read from HBM once.
    if compute_dtype is not None:
        w1 = w1.astype(compute_dtype)
        w2p = w2p.astype(compute_dtype)
    b1_2d = b1.reshape(1, hidden).astype(jnp.float32)
    b2_2d = b2p.reshape(1, out_pad).astype(jnp.float32)

    single_buffer_weights = _buffered_one_supported()
    weight_bufs = 1 if single_buffer_weights else 2

    # ---- Batch-tile selection: generation-aware VMEM budget. ----------------
    x_item = jnp.dtype(x2d.dtype).itemsize
    w_item = jnp.dtype(w1.dtype).itemsize
    o_item = jnp.dtype(out_dtype).itemsize

    def _vmem_bytes(t):
        t8 = _round_up(max(t, 1), 8)
        acts = 2 * t8 * in_pad * x_item              # x tile, double-buffered
        outs = 2 * t8 * out_pad * o_item             # out tile, double-buffered
        hmid = 2 * t8 * hidden * 4                   # fused fc1 intermediates (f32)
        wts = weight_bufs * ((in_pad * hidden + hidden * out_pad) * w_item
                             + (hidden + out_pad) * 4)
        return acts + outs + hmid + wts

    vmem_cap = _vmem_capacity_bytes()
    vmem_budget = int(0.6 * vmem_cap)

    if B <= block_b and _vmem_bytes(B) <= vmem_budget:
        tb = B                                       # one full-batch tile
    else:
        gran = 256 if B >= 512 else 8                # keep the MXU M dim filled
        tb = max(gran, (min(block_b, B) // gran) * gran)
        while tb > gran and _vmem_bytes(tb) > vmem_budget:
            tb = max(gran, ((tb // 2) // gran) * gran)
        # v7x: nudge the tile count to an even number so both TensorCores get
        # the same number of batch tiles (no effect on v5e/v6e's single TC).
        n_tiles = -(-B // tb)
        if n_tiles > 1 and n_tiles % 2 == 1:
            tb_even = max(gran, _round_up(-(-B // (n_tiles + 1)), gran))
            if tb_even <= tb and (-(-B // tb_even)) % 2 == 0:
                tb = tb_even
        tb = min(tb, B)

    grid = (pl.cdiv(B, tb),)   # ragged last block is masked by Pallas; no jnp.pad

    cost = pl.CostEstimate(
        flops=2 * B * in_pad * hidden + 2 * B * hidden * out_pad,
        transcendentals=0,
        bytes_accessed=(B * in_pad * x_item
                        + (in_pad * hidden + hidden * out_pad) * w_item
                        + (hidden + out_pad) * 4
                        + B * out_pad * o_item),
    )

    # Explicit scoped-VMEM limit: v5e's 16 MiB default would otherwise block the
    # bigger tiles; always stay below the physical per-core capacity.
    est = _vmem_bytes(tb)
    vmem_limit = min(int(0.98 * vmem_cap),
                     max(32 * 1024 * 1024, int(1.5 * est) + (4 << 20)))

    weight_kwargs = {}
    if single_buffer_weights:
        # Constant index_map -> never re-fetched; no point double-buffering.
        weight_kwargs = dict(pipeline_mode=pl.Buffered(1))

    in_specs = [
        # Activations stream through the pipeline, one batch tile per step.
        pl.BlockSpec((tb, in_pad), lambda i: (i, 0)),
        # Weights / biases: constant block index -> VMEM-resident across tiles.
        pl.BlockSpec((in_pad, hidden), lambda i: (0, 0), **weight_kwargs),
        pl.BlockSpec((1, hidden), lambda i: (0, 0), **weight_kwargs),
        pl.BlockSpec((hidden, out_pad), lambda i: (0, 0), **weight_kwargs),
        pl.BlockSpec((1, out_pad), lambda i: (0, 0), **weight_kwargs),
    ]

    out_padded = pl.pallas_call(
        _collab_kernel,
        out_shape=jax.ShapeDtypeStruct((B, out_pad), out_dtype),
        grid=grid,
        in_specs=in_specs,
        out_specs=pl.BlockSpec((tb, out_pad), lambda i: (i, 0)),
        compiler_params=pltpu.CompilerParams(
            # Batch tiles are independent -> shard across TensorCores on v7x.
            dimension_semantics=("parallel",),
            vmem_limit_bytes=vmem_limit,
        ),
        cost_estimate=cost,
    )(x2d, w1, b1_2d, w2p, b2_2d)

    # Strip the lane-padding columns (batch was never padded).
    return out_padded[:, :out_dim]


def reference_forward(x, w1, b1, w2, b2):
    """Pure-JAX reference mirroring the PyTorch forward."""
    B = x.shape[0]
    x2d = x.reshape(B, -1)
    h = jnp.maximum(x2d @ w1 + b1, 0.0)
    return h @ w2 + b2


if __name__ == "__main__":
    # Small shapes consistent with the module: x is (batch, channels, dim),
    # fc1: channels*dim -> hidden, fc2: hidden -> dim.
    batch, channels, dim, hidden = 2, 4, 8, 32
    in_dim = channels * dim

    key = jax.random.PRNGKey(0)
    kx, kw1, kb1, kw2, kb2 = jax.random.split(key, 5)

    x = jax.random.normal(kx, (batch, channels, dim), dtype=jnp.float32)

    # Deterministic init mimicking nn.Linear's uniform(-1/sqrt(fan_in), ...).
    lim1 = 1.0 / jnp.sqrt(jnp.float32(in_dim))
    lim2 = 1.0 / jnp.sqrt(jnp.float32(hidden))
    # Stored as (in, out) = PyTorch weight.T
    w1 = jax.random.uniform(kw1, (in_dim, hidden), jnp.float32, -lim1, lim1)
    b1 = jax.random.uniform(kb1, (hidden,), jnp.float32, -lim1, lim1)
    w2 = jax.random.uniform(kw2, (hidden, dim), jnp.float32, -lim2, lim2)
    b2 = jax.random.uniform(kb2, (dim,), jnp.float32, -lim2, lim2)

    ref = reference_forward(x, w1, b1, w2, b2)

    # Exact f32 path.
    fwd_f32 = jax.jit(functools.partial(collaboration_net_forward,
                                        compute_dtype=None))
    out = jax.block_until_ready(fwd_f32(x, w1, b1, w2, b2))
    assert out.shape == (batch, dim)
    assert jnp.allclose(out, ref, atol=1e-5, rtol=1e-5), "f32 mismatch vs reference"

    # Default production path: bf16 MXU operands (f32 accumulation) -> looser tol.
    fwd_bf16 = jax.jit(collaboration_net_forward)
    out_bf16 = jax.block_until_ready(fwd_bf16(x, w1, b1, w2, b2))
    assert out_bf16.shape == (batch, dim)
    assert jnp.allclose(out_bf16, ref, atol=5e-2, rtol=5e-2), "bf16 mismatch"

    # Multi-tile path with a ragged (non-divisible) last batch block, no padding.
    big_b = 1030
    xb = jax.random.normal(kx, (big_b, channels, dim), dtype=jnp.float32)
    fwd_tiled = jax.jit(functools.partial(collaboration_net_forward,
                                          block_b=256, compute_dtype=None))
    out_big = jax.block_until_ready(fwd_tiled(xb, w1, b1, w2, b2))
    ref_big = reference_forward(xb, w1, b1, w2, b2)
    assert out_big.shape == (big_b, dim)
    assert jnp.allclose(out_big, ref_big, atol=1e-5, rtol=1e-5), "tiled mismatch"

    print("KERNEL_OK")
</pallas_src>

<mosaic_0001>
module attributes {stable_mosaic.version = 11 : i64} {
  func.func @_collab_kernel(%arg0: i32, %arg1: memref<2x128xf32, #tpu.memory_space<vmem>>, %arg2: memref<128x32xf32, #tpu.memory_space<vmem>>, %arg3: memref<1x32xf32, #tpu.memory_space<vmem>>, %arg4: memref<32x128xf32, #tpu.memory_space<vmem>>, %arg5: memref<1x128xf32, #tpu.memory_space<vmem>>, %arg6: memref<2x128xf32, #tpu.memory_space<vmem>>) attributes {dimension_semantics = [#tpu.dimension_semantics<parallel>], iteration_bounds = array<i64: 1>, scalar_prefetch = 0 : i64, scratch_operands = 0 : i64, tpu.core_type = #tpu.core_type<tc>, window_params = [{transform_indices = @transform_0, window_bounds = array<i64: 2, 128>}, {pipeline_mode = #tpu.pipeline_mode<synchronous>, transform_indices = @transform_1, window_bounds = array<i64: 128, 32>}, {pipeline_mode = #tpu.pipeline_mode<synchronous>, transform_indices = @transform_2, window_bounds = array<i64: 1, 32>}, {pipeline_mode = #tpu.pipeline_mode<synchronous>, transform_indices = @transform_3, window_bounds = array<i64: 32, 128>}, {pipeline_mode = #tpu.pipeline_mode<synchronous>, transform_indices = @transform_4, window_bounds = array<i64: 1, 128>}, {transform_indices = @transform_5, window_bounds = array<i64: 2, 128>}]} {
    %c0 = arith.constant 0 : index
    %c0_0 = arith.constant 0 : index
    %0 = vector.load %arg1[%c0, %c0_0] : memref<2x128xf32, #tpu.memory_space<vmem>>, vector<2x128xf32>
    %c0_1 = arith.constant 0 : index
    %c0_2 = arith.constant 0 : index
    %1 = vector.load %arg2[%c0_1, %c0_2] : memref<128x32xf32, #tpu.memory_space<vmem>>, vector<128x32xf32>
    %cst = arith.constant dense<0.000000e+00> : vector<2x32xf32>
    %2 = tpu.matmul %0, %1, %cst {dimension_numbers = #tpu.dot_dimension_numbers<[1], [0], [0], [1], [0, 0, 1, 1], [], []>} : vector<2x128xf32>, vector<128x32xf32>, vector<2x32xf32> -> vector<2x32xf32>
    %c0_3 = arith.constant 0 : index
    %c0_4 = arith.constant 0 : index
    %3 = vector.load %arg3[%c0_3, %c0_4] : memref<1x32xf32, #tpu.memory_space<vmem>>, vector<1x32xf32>
    %4 = vector.broadcast %3 : vector<1x32xf32> to vector<2x32xf32>
    %5 = arith.addf %2, %4 : vector<2x32xf32>
    %cst_5 = arith.constant 0.000000e+00 : f32
    %6 = vector.broadcast %cst_5 : f32 to vector<2x32xf32>
    %7 = arith.maximumf %5, %6 : vector<2x32xf32>
    %c0_6 = arith.constant 0 : index
    %c0_7 = arith.constant 0 : index
    %8 = vector.load %arg4[%c0_6, %c0_7] : memref<32x128xf32, #tpu.memory_space<vmem>>, vector<32x128xf32>
    %cst_8 = arith.constant dense<0.000000e+00> : vector<2x128xf32>
    %9 = tpu.matmul %7, %8, %cst_8 {dimension_numbers = #tpu.dot_dimension_numbers<[1], [0], [0], [1], [0, 0, 1, 1], [], []>} : vector<2x32xf32>, vector<32x128xf32>, vector<2x128xf32> -> vector<2x128xf32>
    %c0_9 = arith.constant 0 : index
    %c0_10 = arith.constant 0 : index
    %10 = vector.load %arg5[%c0_9, %c0_10] : memref<1x128xf32, #tpu.memory_space<vmem>>, vector<1x128xf32>
    %11 = vector.broadcast %10 : vector<1x128xf32> to vector<2x128xf32>
    %12 = arith.addf %9, %11 : vector<2x128xf32>
    %c0_11 = arith.constant 0 : index
    %c0_12 = arith.constant 0 : index
    %13 = vector.load %arg6[%c0_11, %c0_12] : memref<2x128xf32, #tpu.memory_space<vmem>>, vector<2x128xf32>
    tpu.vector_store %arg6[%c0_11, %c0_12], %12 {strides = array<i32>} : memref<2x128xf32, #tpu.memory_space<vmem>>, vector<2x128xf32>,
    return
  }
  func.func @transform_0(%arg0: i32) -> (i32, i32) {
    %c0_i32 = arith.constant 0 : i32
    %c0_i32_0 = arith.constant 0 : i32
    return %arg0, %c0_i32 : i32, i32
  }
  func.func @transform_1(%arg0: i32) -> (i32, i32) {
    %c0_i32 = arith.constant 0 : i32
    %c0_i32_0 = arith.constant 0 : i32
    %c0_i32_1 = arith.constant 0 : i32
    return %c0_i32, %c0_i32_0 : i32, i32
  }
  func.func @transform_2(%arg0: i32) -> (i32, i32) {
    %c0_i32 = arith.constant 0 : i32
    %c0_i32_0 = arith.constant 0 : i32
    %c0_i32_1 = arith.constant 0 : i32
    return %c0_i32, %c0_i32_0 : i32, i32
  }
  func.func @transform_3(%arg0: i32) -> (i32, i32) {
    %c0_i32 = arith.constant 0 : i32
    %c0_i32_0 = arith.constant 0 : i32
    %c0_i32_1 = arith.constant 0 : i32
    return %c0_i32, %c0_i32_0 : i32, i32
  }
  func.func @transform_4(%arg0: i32) -> (i32, i32) {
    %c0_i32 = arith.constant 0 : i32
    %c0_i32_0 = arith.constant 0 : i32
    %c0_i32_1 = arith.constant 0 : i32
    return %c0_i32, %c0_i32_0 : i32, i32
  }
  func.func @transform_5(%arg0: i32) -> (i32, i32) {
    %c0_i32 = arith.constant 0 : i32
    %c0_i32_0 = arith.constant 0 : i32
    return %arg0, %c0_i32 : i32, i32
  }
}

</mosaic_0001>

<llo_original>
// kernel: collaboration_net_forward.1
$region0: #{collaboration_net_forward.1}
  #allocation0 [shape = 'u32[]', space=smem, size = 0x4, offset = 0x4, fixed_abs, tag = 'smem constant byte address 0x4 - core index']
  #allocation1 [shape = 'u32[72,128]{1,0:T(1,128)}', space=vmem, size = 0x9000, scoped, tag = 'internal scratch']
  %s0 = inlined_call_operand.vmem [shape: f32[2,128], index: 0, kind: input, shape index: {}]
  %s1 = inlined_call_operand.vmem [shape: f32[128,32], index: 1, kind: input, shape index: {}]
  %s2 = inlined_call_operand.vmem [shape: f32[1,32], index: 2, kind: input, shape index: {}]
  %s3 = inlined_call_operand.vmem [shape: f32[32,128], index: 3, kind: input, shape index: {}]
  %s4 = inlined_call_operand.vmem [shape: f32[1,128], index: 4, kind: input, shape index: {}]
  %s5 = inlined_call_operand.hbm [shape: f32[2,128], index: 5, kind: output, shape index: {}]
  %s6 = sld [smem:[#allocation0]]
  $region30: #{collaboration_net_forward.1} parent=0
    _
  %s8 = ssub.s32 1, %s6
  %s9 = scalar_select 0, %s8, %s6
  $region1: #{collaboration_net_forward.1} parent=0
    #allocation2 [shape = 'u8[1024]{0}', space=vmem, size = 0x400, scoped, tag = 'output window, operand 0, single buffered']
    #allocation3 [shape = 's32[1]{0}', space=sflag, size = 0x4, scoped, tag = 'scoped memory for collaboration_net_forward.1']
    %10 = vsyncpa [#allocation3], 0
    // Predicated region
    $region2: #{collaboration_net_forward.1} parent=1 // pred_check
      _
    $region3: #{collaboration_net_forward.1} parent=1 // pred_check_branch
      %12 = sbr.rel (0) target = $region5
    $region4: #{collaboration_net_forward.1} parent=1 // pred_region
      _
    $region5: #{collaboration_net_forward.1} parent=1 // pred_fallthru
      _
    // Predicated region
    $region6: #{collaboration_net_forward.1} parent=1 // pred_check
      _
    $region7: #{collaboration_net_forward.1} parent=1 // pred_check_branch
      %14 = sbr.rel (0) target = $region9
    $region8: #{collaboration_net_forward.1} parent=1 // pred_region
      _
    $region9: #{collaboration_net_forward.1} parent=1 // pred_fallthru
      _
    // Predicated region
    $region10: #{collaboration_net_forward.1} parent=1 // pred_check
      _
    $region11: #{collaboration_net_forward.1} parent=1 // pred_check_branch
      %16 = sbr.rel (0) target = $region13
    $region12: #{collaboration_net_forward.1} parent=1 // pred_region
      _
    $region13: #{collaboration_net_forward.1} parent=1 // pred_fallthru
      _
    // Predicated region
    $region14: #{collaboration_net_forward.1} parent=1 // pred_check
      _
    $region15: #{collaboration_net_forward.1} parent=1 // pred_check_branch
      %18 = sbr.rel (0) target = $region17
    $region16: #{collaboration_net_forward.1} parent=1 // pred_region
      _
    $region17: #{collaboration_net_forward.1} parent=1 // pred_fallthru
      _
    // Predicated region
    $region18: #{collaboration_net_forward.1} parent=1 // pred_check
      _
    $region19: #{collaboration_net_forward.1} parent=1 // pred_check_branch
      %20 = sbr.rel (0) target = $region21
    $region20: #{collaboration_net_forward.1} parent=1 // pred_region
      _
    $region21: #{collaboration_net_forward.1} parent=1 // pred_fallthru
      _
    %v21 = vld [vmem:[%s0] sm:$0x3]
    %v22 = vld [vmem:[%s1] sm:$0xff]
    %v23 = vld [vmem:[%s1 + $0x8] sm:$0xff]
    %v24 = vld [vmem:[%s1 + $0x10] sm:$0xff]
    %v25 = vld [vmem:[%s1 + $0x18] sm:$0xff]
    %v26 = vld [vmem:[%s1 + $0x20] sm:$0xff]
    %v27 = vld [vmem:[%s1 + $0x28] sm:$0xff]
    %v28 = vld [vmem:[%s1 + $0x30] sm:$0xff]
    %v29 = vld [vmem:[%s1 + $0x38] sm:$0xff]
    %v30 = vld [vmem:[%s1 + $0x40] sm:$0xff]
    %v31 = vld [vmem:[%s1 + $0x48] sm:$0xff]
    %v32 = vld [vmem:[%s1 + $0x50] sm:$0xff]
    %v33 = vld [vmem:[%s1 + $0x58] sm:$0xff]
    %v34 = vld [vmem:[%s1 + $0x60] sm:$0xff]
    %v35 = vld [vmem:[%s1 + $0x68] sm:$0xff]
    %v36 = vld [vmem:[%s1 + $0x70] sm:$0xff]
    %v37 = vld [vmem:[%s1 + $0x78] sm:$0xff]
    %v38 = vld [vmem:[%s2] sm:$0x1]
    %v40 = vperm.slane %v38, 0
    %42 = vmatpush.msra.mxu0 %v37
    %43 = vmatpush.msra.mxu0 %v36
    %44 = vmatpush.msra.mxu0 %v35
    %45 = vmatpush.msra.mxu0 %v34
    %46 = vmatpush.msra.mxu0 %v33
    %47 = vmatpush.msra.mxu0 %v32
    %48 = vmatpush.msra.mxu0 %v31
    %49 = vmatpush.msra.mxu0 %v30
    %50 = vmatpush.msra.mxu0 %v29
    %51 = vmatpush.msra.mxu0 %v28
    %52 = vmatpush.msra.mxu0 %v27
    %53 = vmatpush.msra.mxu0 %v26
    %54 = vmatpush.msra.mxu0 %v25
    %55 = vmatpush.msra.mxu0 %v24
    %56 = vmatpush.msra.mxu0 %v23
    %57 = vmatpush.msra.mxu0 %v22
    %58 = vmatmul.f32.gmra.mxu0 %v21
    %v59 = vpop.f32.mrf.mxu0
    %v60 = vadd.f32 %v40, %v59
    %61 = vdwg.mxu0
    %v62 = vmax.f32 %v60, 0.0
    %v63 = vld [vmem:[%s3] sm:$0xff]
    %v64 = vld [vmem:[%s3 + $0x8] sm:$0xff]
    %v65 = vld [vmem:[%s3 + $0x10] sm:$0xff]
    %v66 = vld [vmem:[%s3 + $0x18] sm:$0xff]
    %v67 = vld [vmem:[%s4] sm:$0x1]
    %v69 = vperm.slane %v67, 0
    %vm71 = vcmask 261120
    %v73 = vsel %vm71, %v62, 0
    %75 = vmatpush.msra.mxu0 0.0
    %76 = vmatpush.msra.mxu0 0.0
    %77 = vmatpush.msra.mxu0 0.0
    %78 = vmatpush.msra.mxu0 0.0
    %79 = vmatpush.msra.mxu0 0.0
    %80 = vmatpush.msra.mxu0 0.0
    %81 = vmatpush.msra.mxu0 0.0
    %82 = vmatpush.msra.mxu0 0.0
    %83 = vmatpush.msra.mxu0 0.0
    %84 = vmatpush.msra.mxu0 0.0
    %85 = vmatpush.msra.mxu0 0.0
    %86 = vmatpush.msra.mxu0 0.0
    %87 = vmatpush.msra.mxu0 %v66
    %88 = vmatpush.msra.mxu0 %v65
    %89 = vmatpush.msra.mxu0 %v64
    %90 = vmatpush.msra.mxu0 %v63
    %91 = vmatmul.f32.gmra.mxu0 %v73
    %v92 = vpop.f32.mrf.mxu0
    %v93 = vadd.f32 %v69, %v92
    %94 = vdwg.mxu0
    %95 = vst [vmem:[#allocation2] sm:$0x3] %v93
    // Predicated region
    $region22: #{collaboration_net_forward.1} parent=1 // pred_check
      _
    $region23: #{collaboration_net_forward.1} parent=1 // pred_check_branch
      %97 = sbr.rel (0) target = $region25
    $region24: #{collaboration_net_forward.1} parent=1 // pred_region
      %99 = vsyncadd [#allocation3], 0
      %s101 = sshll.u32 [#allocation2], 4
      %s102 = int_to_ptr.vmem [resolvable:$true] %s101
      %s103 = sshll.u32 %s5, 4
      %s104 = int_to_ptr.hbm [resolvable:$true] %s103
      %106 = dma.vmem_to_hbm [thread:$0]  %s102, 32, %s104, [#allocation3]
    $region25: #{collaboration_net_forward.1} parent=1 // pred_fallthru
      _
    // Predicated region
    $region26: #{collaboration_net_forward.1} parent=1 // pred_check
      _
    $region27: #{collaboration_net_forward.1} parent=1 // pred_check_branch
      %108 = sbr.rel (0) target = $region29
    $region28: #{collaboration_net_forward.1} parent=1 // pred_region
      %110 = dma.done [#allocation3], 32
    $region29: #{collaboration_net_forward.1} parent=1 // pred_fallthru
      _
    %111 = vsyncpa [#allocation3], 1

</llo_original>
